<compile_context>
chip_gen: v5e
topology: v5e:2x2
jax: 0.10.0
libtpu: 0.0.40
codegen_flags: <defaults>
</compile_context>

<pallas_src>
import functools

import jax
import jax.numpy as jnp
from jax.experimental import pallas as pl
from jax.experimental.pallas import tpu as pltpu


# ----------------------------- Pallas kernel -------------------------------

def _rgcn_fused_kernel(a_ref, dinv_ref, x_ref,
                       w1_ref, b1_ref,
                       w2_ref, b2_ref,
                       wl_ref, bl_ref,
                       o_ref, *, n_rel, n_nodes):
    """Fused conv1 -> ReLU -> conv2 -> Linear.

    a_ref   : (R*N, N)  bf16   0/1 count adjacency, relations stacked on rows
    dinv_ref: (R*N, 1)  f32    1/deg per (relation, target) row
    x_ref   : (N, Cp)   bf16   node features, channel dim padded to 128
    w1_ref  : ((R+1)*Cp, Hp) bf16   [root; W_0; ...; W_{R-1}] stacked on K
    w2_ref  : ((R+1)*Hp, Hp) bf16
    wl_ref  : (Hp, Hp)  bf16   final Linear weight, pre-transposed to (in, out)
    b*_ref  : (1, Hp)   f32
    o_ref   : (N, Hp)   f32
    """
    n = n_nodes
    dinv = dinv_ref[...]                                         # (R*N, 1) f32

    # ---- conv1: one tall aggregation matmul + one wide-K projection ----
    x = x_ref[...]                                               # (N, Cp) bf16
    agg = jnp.dot(a_ref[...], x, preferred_element_type=jnp.float32) * dinv
    aggb = agg.astype(jnp.bfloat16)                              # (R*N, Cp)
    cat = jnp.concatenate(
        [x] + [aggb[r * n:(r + 1) * n] for r in range(n_rel)], axis=1)
    h = jnp.dot(cat, w1_ref[...], preferred_element_type=jnp.float32) + b1_ref[...]
    hb = jnp.maximum(h, 0.0).astype(jnp.bfloat16)                # (N, Hp) bf16

    # ---- conv2 (same structure, re-reads A from VMEM) ----
    agg2 = jnp.dot(a_ref[...], hb, preferred_element_type=jnp.float32) * dinv
    agg2b = agg2.astype(jnp.bfloat16)
    cat2 = jnp.concatenate(
        [hb] + [agg2b[r * n:(r + 1) * n] for r in range(n_rel)], axis=1)
    h2 = jnp.dot(cat2, w2_ref[...], preferred_element_type=jnp.float32) + b2_ref[...]

    # ---- final Linear ----
    out = (jnp.dot(h2.astype(jnp.bfloat16), wl_ref[...],
                   preferred_element_type=jnp.float32) + bl_ref[...])
    o_ref[...] = out.astype(o_ref.dtype)


# ------------------------------ wrappers ------------------------------------

def _pad_to(arr, shape):
    pads = [(0, t - s) for s, t in zip(arr.shape, shape)]
    return jnp.pad(arr, pads)


def build_rel_adj(ei, et, n_nodes, n_rel):
    """Dense mean-normalized adjacency per relation (reference only)."""
    src, dst = ei[0], ei[1]
    a = jnp.zeros((n_rel, n_nodes, n_nodes), jnp.float32)
    a = a.at[et, dst, src].add(1.0)
    deg = a.sum(axis=2, keepdims=True)
    return a / jnp.maximum(deg, 1.0)


def prepare_graph(ei, et, n_nodes, n_rel):
    """Build kernel-side graph tensors ONCE per static graph (hoisted out of jit).

    Returns:
      a_counts: (R*N, N) bf16 count adjacency (exact in bf16)
      dinv    : (R*N, 1) f32  inverse degree per (relation, target) row
    """
    src, dst = ei[0], ei[1]
    a = jnp.zeros((n_rel, n_nodes, n_nodes), jnp.float32)
    a = a.at[et, dst, src].add(1.0)
    deg = a.sum(axis=2)                                           # (R, N)
    dinv = (1.0 / jnp.maximum(deg, 1.0)).reshape(n_rel * n_nodes, 1)
    a_counts = a.reshape(n_rel * n_nodes, n_nodes).astype(jnp.bfloat16)
    return a_counts, dinv


def prepare_params(params, n_rel, lane=128):
    """Pad channel dims to lane-dense widths, pre-stack root+relation weights
    along the contraction dim, cast weights to bf16, pre-transpose the Linear."""
    in_c, hid_c = params["conv1_root"].shape
    in_pad = pl.cdiv(in_c, lane) * lane
    hid_pad = pl.cdiv(hid_c, lane) * lane
    bf = jnp.bfloat16

    # conv1: rows = [root (in_pad, Hp); W_0 (in_pad, Hp); ...; W_{R-1}]
    r1 = _pad_to(params["conv1_root"], (in_pad, hid_pad))
    w1 = _pad_to(params["conv1_w"], (n_rel, in_pad, hid_pad)).reshape(
        n_rel * in_pad, hid_pad)
    w1_stack = jnp.concatenate([r1, w1], axis=0).astype(bf)

    # conv2: same with Hp-wide input blocks.
    r2 = _pad_to(params["conv2_root"], (hid_pad, hid_pad))
    w2 = _pad_to(params["conv2_w"], (n_rel, hid_pad, hid_pad)).reshape(
        n_rel * hid_pad, hid_pad)
    w2_stack = jnp.concatenate([r2, w2], axis=0).astype(bf)

    return {
        "w1": w1_stack,
        "b1": _pad_to(params["conv1_b"], (hid_pad,)).reshape(1, hid_pad),
        "w2": w2_stack,
        "b2": _pad_to(params["conv2_b"], (hid_pad,)).reshape(1, hid_pad),
        # PyTorch Linear stores (out, in); pre-transpose to (in, out).
        "wl": _pad_to(params["lin_w"].T, (hid_pad, hid_pad)).astype(bf),
        "bl": _pad_to(params["lin_b"], (hid_pad,)).reshape(1, hid_pad),
    }


def rgcn_forward(prep, a_counts, dinv, x, *, hid_c):
    n_nodes = x.shape[0]
    hid_pad = prep["b1"].shape[1]
    n_rel = a_counts.shape[0] // n_nodes
    in_pad = prep["w1"].shape[0] // (n_rel + 1)

    # Lane-dense, bf16 node features (zero-padded channels are mathematically free).
    xb = _pad_to(x, (n_nodes, in_pad)).astype(jnp.bfloat16)

    vmem = pl.BlockSpec(memory_space=pltpu.MemorySpace.VMEM)
    out_pad = pl.pallas_call(
        functools.partial(_rgcn_fused_kernel, n_rel=n_rel, n_nodes=n_nodes),
        out_shape=jax.ShapeDtypeStruct((n_nodes, hid_pad), jnp.float32),
        in_specs=[vmem] * 9,
        out_specs=vmem,
        compiler_params=pltpu.CompilerParams(
            vmem_limit_bytes=32 * 1024 * 1024),
    )(a_counts, dinv, xb,
      prep["w1"], prep["b1"],
      prep["w2"], prep["b2"],
      prep["wl"], prep["bl"])

    return out_pad[:, :hid_c]


# ------------------------------ params / ref ---------------------------------

def init_params(key, in_c, hid_c, n_rel):
    ks = jax.random.split(key, 8)
    scale = 0.1
    return {
        "conv1_w": scale * jax.random.normal(ks[0], (n_rel, in_c, hid_c), jnp.float32),
        "conv1_root": scale * jax.random.normal(ks[1], (in_c, hid_c), jnp.float32),
        "conv1_b": scale * jax.random.normal(ks[2], (hid_c,), jnp.float32),
        "conv2_w": scale * jax.random.normal(ks[3], (n_rel, hid_c, hid_c), jnp.float32),
        "conv2_root": scale * jax.random.normal(ks[4], (hid_c, hid_c), jnp.float32),
        "conv2_b": scale * jax.random.normal(ks[5], (hid_c,), jnp.float32),
        "lin_w": scale * jax.random.normal(ks[6], (hid_c, hid_c), jnp.float32),
        "lin_b": scale * jax.random.normal(ks[7], (hid_c,), jnp.float32),
    }


def rgcn_forward_ref(params, x, ei, et, n_rel):
    """Pure-JAX f32 reference."""
    n_nodes = x.shape[0]
    a = build_rel_adj(ei, et, n_nodes, n_rel)

    def conv(xx, w, w_root, b):
        out = xx @ w_root + b
        out = out + jnp.einsum("rij,jc,rco->io", a, xx, w)
        return out

    h = jax.nn.relu(conv(x, params["conv1_w"], params["conv1_root"], params["conv1_b"]))
    h = conv(h, params["conv2_w"], params["conv2_root"], params["conv2_b"])
    return h @ params["lin_w"].T + params["lin_b"]


# --------------------------------- main --------------------------------------

if __name__ == "__main__":
    N_NODES, IN_C, HID_C, N_REL, N_EDGES = 64, 16, 32, 3, 128

    key = jax.random.PRNGKey(0)
    kx, ke, kt, kp = jax.random.split(key, 4)

    x = jax.random.normal(kx, (N_NODES, IN_C), jnp.float32)
    ei = jax.random.randint(ke, (2, N_EDGES), 0, N_NODES, jnp.int32)
    et = jax.random.randint(kt, (N_EDGES,), 0, N_REL, jnp.int32)

    params = init_params(kp, IN_C, HID_C, N_REL)
    prep = prepare_params(params, N_REL)
    # Graph tensors built ONCE (static graph) — not inside the jitted forward.
    a_counts, dinv = prepare_graph(ei, et, N_NODES, N_REL)

    fwd = jax.jit(functools.partial(rgcn_forward, hid_c=HID_C))
    out = jax.block_until_ready(fwd(prep, a_counts, dinv, x))

    ref = rgcn_forward_ref(params, x, ei, et, N_REL)
    assert out.shape == (N_NODES, HID_C)
    # bf16 MXU inputs with exact count adjacency + f32 mean scaling -> tighter
    # tolerance than the previous 5e-2.
    assert jnp.allclose(out, ref, atol=3e-2, rtol=3e-2), float(
        jnp.max(jnp.abs(out - ref)))

    print("KERNEL_OK")
</pallas_src>

<mosaic_0001>
module attributes {stable_mosaic.version = 11 : i64} {
  func.func @_rgcn_fused_kernel(%arg0: memref<192x64xbf16, #tpu.memory_space<vmem>>, %arg1: memref<192x1xf32, #tpu.memory_space<vmem>>, %arg2: memref<64x128xbf16, #tpu.memory_space<vmem>>, %arg3: memref<512x128xbf16, #tpu.memory_space<vmem>>, %arg4: memref<1x128xf32, #tpu.memory_space<vmem>>, %arg5: memref<512x128xbf16, #tpu.memory_space<vmem>>, %arg6: memref<1x128xf32, #tpu.memory_space<vmem>>, %arg7: memref<128x128xbf16, #tpu.memory_space<vmem>>, %arg8: memref<1x128xf32, #tpu.memory_space<vmem>>, %arg9: memref<64x128xf32, #tpu.memory_space<vmem>>) attributes {dimension_semantics = [], scalar_prefetch = 0 : i64, scratch_operands = 0 : i64, tpu.core_type = #tpu.core_type<tc>} {
    %c0 = arith.constant 0 : index
    %c0_0 = arith.constant 0 : index
    %0 = vector.load %arg1[%c0, %c0_0] : memref<192x1xf32, #tpu.memory_space<vmem>>, vector<192x1xf32>
    %c0_1 = arith.constant 0 : index
    %c0_2 = arith.constant 0 : index
    %1 = vector.load %arg2[%c0_1, %c0_2] : memref<64x128xbf16, #tpu.memory_space<vmem>>, vector<64x128xbf16>
    %c0_3 = arith.constant 0 : index
    %c0_4 = arith.constant 0 : index
    %2 = vector.load %arg0[%c0_3, %c0_4] : memref<192x64xbf16, #tpu.memory_space<vmem>>, vector<192x64xbf16>
    %cst = arith.constant dense<0.000000e+00> : vector<192x128xf32>
    %3 = tpu.matmul %2, %1, %cst {dimension_numbers = #tpu.dot_dimension_numbers<[1], [0], [0], [1], [0, 0, 1, 1], [], []>} : vector<192x64xbf16>, vector<64x128xbf16>, vector<192x128xf32> -> vector<192x128xf32>
    %4 = vector.broadcast %0 : vector<192x1xf32> to vector<192x128xf32>
    %5 = arith.mulf %3, %4 : vector<192x128xf32>
    %6 = arith.truncf %5 : vector<192x128xf32> to vector<192x128xbf16>
    %7 = vector.extract_strided_slice %6 {offsets = [0, 0], sizes = [64, 128], strides = [1, 1]} : vector<192x128xbf16> to vector<64x128xbf16>
    %8 = vector.extract_strided_slice %6 {offsets = [64, 0], sizes = [64, 128], strides = [1, 1]} : vector<192x128xbf16> to vector<64x128xbf16>
    %9 = vector.extract_strided_slice %6 {offsets = [128, 0], sizes = [64, 128], strides = [1, 1]} : vector<192x128xbf16> to vector<64x128xbf16>
    %10 = tpu.concatenate %1, %7, %8, %9 in 1 : vector<64x128xbf16>, vector<64x128xbf16>, vector<64x128xbf16>, vector<64x128xbf16> -> vector<64x512xbf16>
    %c0_5 = arith.constant 0 : index
    %c0_6 = arith.constant 0 : index
    %11 = vector.load %arg3[%c0_5, %c0_6] : memref<512x128xbf16, #tpu.memory_space<vmem>>, vector<512x128xbf16>
    %cst_7 = arith.constant dense<0.000000e+00> : vector<64x128xf32>
    %12 = tpu.matmul %10, %11, %cst_7 {dimension_numbers = #tpu.dot_dimension_numbers<[1], [0], [0], [1], [0, 0, 1, 1], [], []>} : vector<64x512xbf16>, vector<512x128xbf16>, vector<64x128xf32> -> vector<64x128xf32>
    %c0_8 = arith.constant 0 : index
    %c0_9 = arith.constant 0 : index
    %13 = vector.load %arg4[%c0_8, %c0_9] : memref<1x128xf32, #tpu.memory_space<vmem>>, vector<1x128xf32>
    %14 = vector.broadcast %13 : vector<1x128xf32> to vector<64x128xf32>
    %15 = arith.addf %12, %14 : vector<64x128xf32>
    %cst_10 = arith.constant 0.000000e+00 : f32
    %16 = vector.broadcast %cst_10 : f32 to vector<64x128xf32>
    %17 = arith.maximumf %15, %16 : vector<64x128xf32>
    %18 = arith.truncf %17 : vector<64x128xf32> to vector<64x128xbf16>
    %c0_11 = arith.constant 0 : index
    %c0_12 = arith.constant 0 : index
    %19 = vector.load %arg0[%c0_11, %c0_12] : memref<192x64xbf16, #tpu.memory_space<vmem>>, vector<192x64xbf16>
    %cst_13 = arith.constant dense<0.000000e+00> : vector<192x128xf32>
    %20 = tpu.matmul %19, %18, %cst_13 {dimension_numbers = #tpu.dot_dimension_numbers<[1], [0], [0], [1], [0, 0, 1, 1], [], []>} : vector<192x64xbf16>, vector<64x128xbf16>, vector<192x128xf32> -> vector<192x128xf32>
    %21 = vector.broadcast %0 : vector<192x1xf32> to vector<192x128xf32>
    %22 = arith.mulf %20, %21 : vector<192x128xf32>
    %23 = arith.truncf %22 : vector<192x128xf32> to vector<192x128xbf16>
    %24 = vector.extract_strided_slice %23 {offsets = [0, 0], sizes = [64, 128], strides = [1, 1]} : vector<192x128xbf16> to vector<64x128xbf16>
    %25 = vector.extract_strided_slice %23 {offsets = [64, 0], sizes = [64, 128], strides = [1, 1]} : vector<192x128xbf16> to vector<64x128xbf16>
    %26 = vector.extract_strided_slice %23 {offsets = [128, 0], sizes = [64, 128], strides = [1, 1]} : vector<192x128xbf16> to vector<64x128xbf16>
    %27 = tpu.concatenate %18, %24, %25, %26 in 1 : vector<64x128xbf16>, vector<64x128xbf16>, vector<64x128xbf16>, vector<64x128xbf16> -> vector<64x512xbf16>
    %c0_14 = arith.constant 0 : index
    %c0_15 = arith.constant 0 : index
    %28 = vector.load %arg5[%c0_14, %c0_15] : memref<512x128xbf16, #tpu.memory_space<vmem>>, vector<512x128xbf16>
    %cst_16 = arith.constant dense<0.000000e+00> : vector<64x128xf32>
    %29 = tpu.matmul %27, %28, %cst_16 {dimension_numbers = #tpu.dot_dimension_numbers<[1], [0], [0], [1], [0, 0, 1, 1], [], []>} : vector<64x512xbf16>, vector<512x128xbf16>, vector<64x128xf32> -> vector<64x128xf32>
    %c0_17 = arith.constant 0 : index
    %c0_18 = arith.constant 0 : index
    %30 = vector.load %arg6[%c0_17, %c0_18] : memref<1x128xf32, #tpu.memory_space<vmem>>, vector<1x128xf32>
    %31 = vector.broadcast %30 : vector<1x128xf32> to vector<64x128xf32>
    %32 = arith.addf %29, %31 : vector<64x128xf32>
    %33 = arith.truncf %32 : vector<64x128xf32> to vector<64x128xbf16>
    %c0_19 = arith.constant 0 : index
    %c0_20 = arith.constant 0 : index
    %34 = vector.load %arg7[%c0_19, %c0_20] : memref<128x128xbf16, #tpu.memory_space<vmem>>, vector<128x128xbf16>
    %cst_21 = arith.constant dense<0.000000e+00> : vector<64x128xf32>
    %35 = tpu.matmul %33, %34, %cst_21 {dimension_numbers = #tpu.dot_dimension_numbers<[1], [0], [0], [1], [0, 0, 1, 1], [], []>} : vector<64x128xbf16>, vector<128x128xbf16>, vector<64x128xf32> -> vector<64x128xf32>
    %c0_22 = arith.constant 0 : index
    %c0_23 = arith.constant 0 : index
    %36 = vector.load %arg8[%c0_22, %c0_23] : memref<1x128xf32, #tpu.memory_space<vmem>>, vector<1x128xf32>
    %37 = vector.broadcast %36 : vector<1x128xf32> to vector<64x128xf32>
    %38 = arith.addf %35, %37 : vector<64x128xf32>
    %c0_24 = arith.constant 0 : index
    %c0_25 = arith.constant 0 : index
    %39 = vector.load %arg9[%c0_24, %c0_25] : memref<64x128xf32, #tpu.memory_space<vmem>>, vector<64x128xf32>
    tpu.vector_store %arg9[%c0_24, %c0_25], %38 {strides = array<i32>} : memref<64x128xf32, #tpu.memory_space<vmem>>, vector<64x128xf32>,
    return
  }
}

</mosaic_0001>

<llo_original>
// kernel: rgcn_forward.1
$region0: #{rgcn_forward.1}
  #allocation0 [shape = 'u32[]', space=smem, size = 0x4, offset = 0x4, fixed_abs, tag = 'smem constant byte address 0x4 - core index']
  #allocation1 [shape = 'u32[72,128]{1,0:T(1,128)}', space=vmem, size = 0x9000, scoped, tag = 'internal scratch']
  %s0 = inlined_call_operand.vmem [shape: bf16[192,64], index: 0, kind: input, shape index: {}]
  %s1 = inlined_call_operand.vmem [shape: f32[192,1], index: 1, kind: input, shape index: {}]
  %s2 = inlined_call_operand.vmem [shape: bf16[64,128], index: 2, kind: input, shape index: {}]
  %s3 = inlined_call_operand.vmem [shape: bf16[512,128], index: 3, kind: input, shape index: {}]
  %s4 = inlined_call_operand.vmem [shape: f32[1,128], index: 4, kind: input, shape index: {}]
  %s5 = inlined_call_operand.hbm [shape: bf16[512,128], index: 5, kind: input, shape index: {}]
  %s6 = inlined_call_operand.vmem [shape: f32[1,128], index: 6, kind: input, shape index: {}]
  %s7 = inlined_call_operand.vmem [shape: bf16[128,128], index: 7, kind: input, shape index: {}]
  %s8 = inlined_call_operand.vmem [shape: f32[1,128], index: 8, kind: input, shape index: {}]
  %s9 = inlined_call_operand.vmem [shape: f32[64,128], index: 9, kind: output, shape index: {}]
  %s10 = sld [smem:[#allocation0]]
  $region50: #{rgcn_forward.1} parent=0
    _
  %s12 = ssub.s32 1, %s10
  %s13 = scalar_select 0, %s12, %s10
  $region1: #{rgcn_forward.1} parent=0
    #allocation2 [shape = 'u8[131072]{0}', space=vmem, size = 0x20000, scoped, tag = 'input window, operand 5, single buffered']
    #allocation3 [shape = 's32[1]{0}', space=sflag, size = 0x4, scoped, tag = 'scoped memory for rgcn_forward.1']
    %14 = vsyncpa [#allocation3], 0
    // Predicated region
    $region2: #{rgcn_forward.1} parent=1 // pred_check
      _
    $region3: #{rgcn_forward.1} parent=1 // pred_check_branch
      %16 = sbr.rel (0) target = $region5
    $region4: #{rgcn_forward.1} parent=1 // pred_region
      _
    $region5: #{rgcn_forward.1} parent=1 // pred_fallthru
      _
    // Predicated region
    $region6: #{rgcn_forward.1} parent=1 // pred_check
      _
    $region7: #{rgcn_forward.1} parent=1 // pred_check_branch
      %18 = sbr.rel (0) target = $region9
    $region8: #{rgcn_forward.1} parent=1 // pred_region
      _
    $region9: #{rgcn_forward.1} parent=1 // pred_fallthru
      _
    // Predicated region
    $region10: #{rgcn_forward.1} parent=1 // pred_check
      _
    $region11: #{rgcn_forward.1} parent=1 // pred_check_branch
      %20 = sbr.rel (0) target = $region13
    $region12: #{rgcn_forward.1} parent=1 // pred_region
      _
    $region13: #{rgcn_forward.1} parent=1 // pred_fallthru
      _
    // Predicated region
    $region14: #{rgcn_forward.1} parent=1 // pred_check
      _
    $region15: #{rgcn_forward.1} parent=1 // pred_check_branch
      %22 = sbr.rel (0) target = $region17
    $region16: #{rgcn_forward.1} parent=1 // pred_region
      _
    $region17: #{rgcn_forward.1} parent=1 // pred_fallthru
      _
    // Predicated region
    $region18: #{rgcn_forward.1} parent=1 // pred_check
      _
    $region19: #{rgcn_forward.1} parent=1 // pred_check_branch
      %24 = sbr.rel (0) target = $region21
    $region20: #{rgcn_forward.1} parent=1 // pred_region
      _
    $region21: #{rgcn_forward.1} parent=1 // pred_fallthru
      _
    // Predicated region
    $region22: #{rgcn_forward.1} parent=1 // pred_check
      _
    $region23: #{rgcn_forward.1} parent=1 // pred_check_branch
      %26 = sbr.rel (0) target = $region25
    $region24: #{rgcn_forward.1} parent=1 // pred_region
      %28 = vsyncadd [#allocation3], 0
      %s29 = sshll.u32 %s5, 4
      %s30 = int_to_ptr.hbm [resolvable:$true] %s29
      %s31 = sshll.u32 [#allocation2], 4
      %s32 = int_to_ptr.vmem [resolvable:$true] %s31
      %37 = dma.hbm_to_vmem [thread:$0]  %s30, 4096, %s32, [#allocation3], 64, 64, 4
    $region25: #{rgcn_forward.1} parent=1 // pred_fallthru
      _
    // Predicated region
    $region26: #{rgcn_forward.1} parent=1 // pred_check
      _
    $region27: #{rgcn_forward.1} parent=1 // pred_check_branch
      %39 = sbr.rel (0) target = $region29
    $region28: #{rgcn_forward.1} parent=1 // pred_region
      _
    $region29: #{rgcn_forward.1} parent=1 // pred_fallthru
      _
    // Predicated region
    $region30: #{rgcn_forward.1} parent=1 // pred_check
      _
    $region31: #{rgcn_forward.1} parent=1 // pred_check_branch
      %41 = sbr.rel (0) target = $region33
    $region32: #{rgcn_forward.1} parent=1 // pred_region
      _
    $region33: #{rgcn_forward.1} parent=1 // pred_fallthru
      _
    // Predicated region
    $region34: #{rgcn_forward.1} parent=1 // pred_check
      _
    $region35: #{rgcn_forward.1} parent=1 // pred_check_branch
      %43 = sbr.rel (0) target = $region37
    $region36: #{rgcn_forward.1} parent=1 // pred_region
      _
    $region37: #{rgcn_forward.1} parent=1 // pred_fallthru
      _
    // Predicated region
    $region38: #{rgcn_forward.1} parent=1 // pred_check
      _
    $region39: #{rgcn_forward.1} parent=1 // pred_check_branch
      %45 = sbr.rel (0) target = $region41
    $region40: #{rgcn_forward.1} parent=1 // pred_region
      %47 = dma.done [#allocation3], 4096
    $region41: #{rgcn_forward.1} parent=1 // pred_fallthru
      _
    %v49 = vld [vmem:[%s1] sm:$0xff]
    %v50 = vld [vmem:[%s1 + $0x8] sm:$0xff]
    %v51 = vld [vmem:[%s1 + $0x10] sm:$0xff]
    %v52 = vld [vmem:[%s1 + $0x18] sm:$0xff]
    %v53 = vld [vmem:[%s1 + $0x20] sm:$0xff]
    %v54 = vld [vmem:[%s1 + $0x28] sm:$0xff]
    %v55 = vld [vmem:[%s1 + $0x30] sm:$0xff]
    %v56 = vld [vmem:[%s1 + $0x38] sm:$0xff]
    %v57 = vld [vmem:[%s1 + $0x40] sm:$0xff]
    %v58 = vld [vmem:[%s1 + $0x48] sm:$0xff]
    %v59 = vld [vmem:[%s1 + $0x50] sm:$0xff]
    %v60 = vld [vmem:[%s1 + $0x58] sm:$0xff]
    %v61 = vld [vmem:[%s1 + $0x60] sm:$0xff]
    %v62 = vld [vmem:[%s1 + $0x68] sm:$0xff]
    %v63 = vld [vmem:[%s1 + $0x70] sm:$0xff]
    %v64 = vld [vmem:[%s1 + $0x78] sm:$0xff]
    %v65 = vld [vmem:[%s1 + $0x80] sm:$0xff]
    %v66 = vld [vmem:[%s1 + $0x88] sm:$0xff]
    %v67 = vld [vmem:[%s1 + $0x90] sm:$0xff]
    %v68 = vld [vmem:[%s1 + $0x98] sm:$0xff]
    %v69 = vld [vmem:[%s1 + $0xa0] sm:$0xff]
    %v70 = vld [vmem:[%s1 + $0xa8] sm:$0xff]
    %v71 = vld [vmem:[%s1 + $0xb0] sm:$0xff]
    %v72 = vld [vmem:[%s1 + $0xb8] sm:$0xff]
    %v73 = vld [vmem:[%s2] sm:$0xf]
    %v74 = vld [vmem:[%s2 + $0x4] sm:$0xf]
    %v75 = vld [vmem:[%s2 + $0x8] sm:$0xf]
    %v76 = vld [vmem:[%s2 + $0xc] sm:$0xf]
    %v77 = vld [vmem:[%s2 + $0x10] sm:$0xf]
    %v78 = vld [vmem:[%s2 + $0x14] sm:$0xf]
    %v79 = vld [vmem:[%s2 + $0x18] sm:$0xf]
    %v80 = vld [vmem:[%s2 + $0x1c] sm:$0xf]
    %v81 = vld [vmem:[%s0] sm:$0xf]
    %v82 = vld [vmem:[%s0 + $0x4] sm:$0xf]
    %v83 = vld [vmem:[%s0 + $0x8] sm:$0xf]
    %v84 = vld [vmem:[%s0 + $0xc] sm:$0xf]
    %v85 = vld [vmem:[%s0 + $0x10] sm:$0xf]
    %v86 = vld [vmem:[%s0 + $0x14] sm:$0xf]
    %v87 = vld [vmem:[%s0 + $0x18] sm:$0xf]
    %v88 = vld [vmem:[%s0 + $0x1c] sm:$0xf]
    %v89 = vld [vmem:[%s0 + $0x20] sm:$0xf]
    %v90 = vld [vmem:[%s0 + $0x24] sm:$0xf]
    %v91 = vld [vmem:[%s0 + $0x28] sm:$0xf]
    %v92 = vld [vmem:[%s0 + $0x2c] sm:$0xf]
    %v93 = vld [vmem:[%s0 + $0x30] sm:$0xf]
    %v94 = vld [vmem:[%s0 + $0x34] sm:$0xf]
    %v95 = vld [vmem:[%s0 + $0x38] sm:$0xf]
    %v96 = vld [vmem:[%s0 + $0x3c] sm:$0xf]
    %v97 = vld [vmem:[%s0 + $0x40] sm:$0xf]
    %v98 = vld [vmem:[%s0 + $0x44] sm:$0xf]
    %v99 = vld [vmem:[%s0 + $0x48] sm:$0xf]
    %v100 = vld [vmem:[%s0 + $0x4c] sm:$0xf]
    %v101 = vld [vmem:[%s0 + $0x50] sm:$0xf]
    %v102 = vld [vmem:[%s0 + $0x54] sm:$0xf]
    %v103 = vld [vmem:[%s0 + $0x58] sm:$0xf]
    %v104 = vld [vmem:[%s0 + $0x5c] sm:$0xf]
    %v129 = vunpack.c.l.b16 %v81
    %v130 = vunpack.c.l.b16 %v82
    %v131 = vunpack.c.l.b16 %v83
    %v132 = vunpack.c.l.b16 %v84
    %v133 = vunpack.c.l.b16 %v85
    %v134 = vunpack.c.l.b16 %v86
    %v135 = vunpack.c.l.b16 %v87
    %v136 = vunpack.c.l.b16 %v88
    %v137 = vunpack.c.l.b16 %v89
    %v138 = vunpack.c.l.b16 %v90
    %v139 = vunpack.c.l.b16 %v91
    %v140 = vunpack.c.l.b16 %v92
    %v141 = vunpack.c.l.b16 %v93
    %v142 = vunpack.c.l.b16 %v94
    %v143 = vunpack.c.l.b16 %v95
    %v144 = vunpack.c.l.b16 %v96
    %v145 = vunpack.c.l.b16 %v97
    %v146 = vunpack.c.l.b16 %v98
    %v147 = vunpack.c.l.b16 %v99
    %v148 = vunpack.c.l.b16 %v100
    %v149 = vunpack.c.l.b16 %v101
    %v150 = vunpack.c.l.b16 %v102
    %v151 = vunpack.c.l.b16 %v103
    %v152 = vunpack.c.l.b16 %v104
    %v153 = vpack.c.b16 %v130, %v129
    %v154 = vpack.c.b16 %v132, %v131
    %v155 = vpack.c.b16 %v134, %v133
    %v156 = vpack.c.b16 %v136, %v135
    %v157 = vpack.c.b16 %v138, %v137
    %v158 = vpack.c.b16 %v140, %v139
    %v159 = vpack.c.b16 %v142, %v141
    %v160 = vpack.c.b16 %v144, %v143
    %v161 = vpack.c.b16 %v146, %v145
    %v162 = vpack.c.b16 %v148, %v147
    %v163 = vpack.c.b16 %v150, %v149
    %v164 = vpack.c.b16 %v152, %v151
    %v173 = vunpack.c.l.b16 %v73
    %v174 = vunpack.c.l.b16 %v74
    %v175 = vunpack.c.l.b16 %v75
    %v176 = vunpack.c.l.b16 %v76
    %v177 = vunpack.c.l.b16 %v77
    %v178 = vunpack.c.l.b16 %v78
    %v179 = vunpack.c.l.b16 %v79
    %v180 = vunpack.c.l.b16 %v80
    %v181 = vpack.c.b16 %v174, %v173
    %v182 = vpack.c.b16 %v176, %v175
    %v183 = vpack.c.b16 %v178, %v177
    %v184 = vpack.c.b16 %v180, %v179
    %vm189 = vcmask 523264
    %v191 = vsel %vm189, %v153, 0
    %v194 = vsel %vm189, %v154, 0
    %v197 = vsel %vm189, %v155, 0
    %v200 = vsel %vm189, %v156, 0
    %v203 = vsel %vm189, %v157, 0
    %v206 = vsel %vm189, %v158, 0
    %v209 = vsel %vm189, %v159, 0
    %v212 = vsel %vm189, %v160, 0
    %v215 = vsel %vm189, %v161, 0
    %v218 = vsel %vm189, %v162, 0
    %v221 = vsel %vm189, %v163, 0
    %v224 = vsel %vm189, %v164, 0
    %226 = vmatpush.bf16.msra.mxu0 0
    %227 = vmatpush.bf16.msra.mxu0 0
    %228 = vmatpush.bf16.msra.mxu0 0
    %229 = vmatpush.bf16.msra.mxu0 0
    %230 = vmatpush.bf16.msra.mxu0 %v184
    %231 = vmatpush.bf16.msra.mxu0 %v183
    %232 = vmatpush.bf16.msra.mxu0 %v182
    %233 = vmatpush.bf16.msra.mxu0 %v181
    %234 = vmatmul.bf16.gmra.mxu0 %v191
    %v235 = vpop.f32.mrf.mxu0
    %v236 = vadd.f32 0.0, %v235
    %v237 = vpop.f32.mrf.mxu0
    %v238 = vadd.f32 0.0, %v237
    %239 = vmatmul.bf16.gmra.mxu0 %v194
    %v240 = vpop.f32.mrf.mxu0
    %v241 = vadd.f32 0.0, %v240
    %v242 = vpop.f32.mrf.mxu0
    %v243 = vadd.f32 0.0, %v242
    %244 = vmatmul.bf16.gmra.mxu0 %v197
    %v245 = vpop.f32.mrf.mxu0
    %v246 = vadd.f32 0.0, %v245
    %v247 = vpop.f32.mrf.mxu0
    %v248 = vadd.f32 0.0, %v247
    %249 = vmatmul.bf16.gmra.mxu0 %v200
    %v250 = vpop.f32.mrf.mxu0
    %v251 = vadd.f32 0.0, %v250
    %v252 = vpop.f32.mrf.mxu0
    %v253 = vadd.f32 0.0, %v252
    %254 = vmatmul.bf16.gmra.mxu0 %v203
    %v255 = vpop.f32.mrf.mxu0
    %v256 = vadd.f32 0.0, %v255
    %v257 = vpop.f32.mrf.mxu0
    %v258 = vadd.f32 0.0, %v257
    %259 = vmatmul.bf16.gmra.mxu0 %v206
    %v260 = vpop.f32.mrf.mxu0
    %v261 = vadd.f32 0.0, %v260
    %v262 = vpop.f32.mrf.mxu0
    %v263 = vadd.f32 0.0, %v262
    %264 = vmatmul.bf16.gmra.mxu0 %v209
    %v265 = vpop.f32.mrf.mxu0
    %v266 = vadd.f32 0.0, %v265
    %v267 = vpop.f32.mrf.mxu0
    %v268 = vadd.f32 0.0, %v267
    %269 = vmatmul.bf16.gmra.mxu0 %v212
    %v270 = vpop.f32.mrf.mxu0
    %v271 = vadd.f32 0.0, %v270
    %v272 = vpop.f32.mrf.mxu0
    %v273 = vadd.f32 0.0, %v272
    %274 = vmatmul.bf16.gmra.mxu0 %v215
    %v275 = vpop.f32.mrf.mxu0
    %v276 = vadd.f32 0.0, %v275
    %v277 = vpop.f32.mrf.mxu0
    %v278 = vadd.f32 0.0, %v277
    %279 = vmatmul.bf16.gmra.mxu0 %v218
    %v280 = vpop.f32.mrf.mxu0
    %v281 = vadd.f32 0.0, %v280
    %v282 = vpop.f32.mrf.mxu0
    %v283 = vadd.f32 0.0, %v282
    %284 = vmatmul.bf16.gmra.mxu0 %v221
    %v285 = vpop.f32.mrf.mxu0
    %v286 = vadd.f32 0.0, %v285
    %v287 = vpop.f32.mrf.mxu0
    %v288 = vadd.f32 0.0, %v287
    %289 = vmatmul.bf16.gmra.mxu0 %v224
    %v290 = vpop.f32.mrf.mxu0
    %v291 = vadd.f32 0.0, %v290
    %v292 = vpop.f32.mrf.mxu0
    %v293 = vadd.f32 0.0, %v292
    %294 = vdwg.mxu0
    %296 = vset.pattern.permute.xlu0 0
    %297 = vperm.xlu0 %296, %v49
    %v298 = vpop.permute.xlu0 %297
    %301 = vset.pattern.permute.xlu0 0
    %302 = vperm.xlu0 %301, %v50
    %v303 = vpop.permute.xlu0 %302
    %306 = vset.pattern.permute.xlu0 0
    %307 = vperm.xlu0 %306, %v51
    %v308 = vpop.permute.xlu0 %307
    %311 = vset.pattern.permute.xlu0 0
    %312 = vperm.xlu0 %311, %v52
    %v313 = vpop.permute.xlu0 %312
    %316 = vset.pattern.permute.xlu0 0
    %317 = vperm.xlu0 %316, %v53
    %v318 = vpop.permute.xlu0 %317
    %321 = vset.pattern.permute.xlu0 0
    %322 = vperm.xlu0 %321, %v54
    %v323 = vpop.permute.xlu0 %322
    %326 = vset.pattern.permute.xlu0 0
    %327 = vperm.xlu0 %326, %v55
    %v328 = vpop.permute.xlu0 %327
    %331 = vset.pattern.permute.xlu0 0
    %332 = vperm.xlu0 %331, %v56
    %v333 = vpop.permute.xlu0 %332
    %336 = vset.pattern.permute.xlu0 0
    %337 = vperm.xlu0 %336, %v57
    %v338 = vpop.permute.xlu0 %337
    %341 = vset.pattern.permute.xlu0 0
    %342 = vperm.xlu0 %341, %v58
    %v343 = vpop.permute.xlu0 %342
    %346 = vset.pattern.permute.xlu0 0
    %347 = vperm.xlu0 %346, %v59
    %v348 = vpop.permute.xlu0 %347
    %351 = vset.pattern.permute.xlu0 0
    %352 = vperm.xlu0 %351, %v60
    %v353 = vpop.permute.xlu0 %352
    %356 = vset.pattern.permute.xlu0 0
    %357 = vperm.xlu0 %356, %v61
    %v358 = vpop.permute.xlu0 %357
    %361 = vset.pattern.permute.xlu0 0
    %362 = vperm.xlu0 %361, %v62
    %v363 = vpop.permute.xlu0 %362
    %366 = vset.pattern.permute.xlu0 0
    %367 = vperm.xlu0 %366, %v63
    %v368 = vpop.permute.xlu0 %367
    %371 = vset.pattern.permute.xlu0 0
    %372 = vperm.xlu0 %371, %v64
    %v373 = vpop.permute.xlu0 %372
    %376 = vset.pattern.permute.xlu0 0
    %377 = vperm.xlu0 %376, %v65
    %v378 = vpop.permute.xlu0 %377
    %381 = vset.pattern.permute.xlu0 0
    %382 = vperm.xlu0 %381, %v66
    %v383 = vpop.permute.xlu0 %382
    %386 = vset.pattern.permute.xlu0 0
    %387 = vperm.xlu0 %386, %v67
    %v388 = vpop.permute.xlu0 %387
    %391 = vset.pattern.permute.xlu0 0
    %392 = vperm.xlu0 %391, %v68
    %v393 = vpop.permute.xlu0 %392
    %396 = vset.pattern.permute.xlu0 0
    %397 = vperm.xlu0 %396, %v69
    %v398 = vpop.permute.xlu0 %397
    %401 = vset.pattern.permute.xlu0 0
    %402 = vperm.xlu0 %401, %v70
    %v403 = vpop.permute.xlu0 %402
    %406 = vset.pattern.permute.xlu0 0
    %407 = vperm.xlu0 %406, %v71
    %v408 = vpop.permute.xlu0 %407
    %411 = vset.pattern.permute.xlu0 0
    %412 = vperm.xlu0 %411, %v72
    %v413 = vpop.permute.xlu0 %412
    %v415 = vmul.f32 %v236, %v298
    %v416 = vmul.f32 %v238, %v303
    %v417 = vmul.f32 %v241, %v308
    %v418 = vmul.f32 %v243, %v313
    %v419 = vmul.f32 %v246, %v318
    %v420 = vmul.f32 %v248, %v323
    %v421 = vmul.f32 %v251, %v328
    %v422 = vmul.f32 %v253, %v333
    %v423 = vmul.f32 %v256, %v338
    %v424 = vmul.f32 %v258, %v343
    %v425 = vmul.f32 %v261, %v348
    %v426 = vmul.f32 %v263, %v353
    %v427 = vmul.f32 %v266, %v358
    %v428 = vmul.f32 %v268, %v363
    %v429 = vmul.f32 %v271, %v368
    %v430 = vmul.f32 %v273, %v373
    %v431 = vmul.f32 %v276, %v378
    %v432 = vmul.f32 %v278, %v383
    %v433 = vmul.f32 %v281, %v388
    %v434 = vmul.f32 %v283, %v393
    %v435 = vmul.f32 %v286, %v398
    %v436 = vmul.f32 %v288, %v403
    %v437 = vmul.f32 %v291, %v408
    %v438 = vmul.f32 %v293, %v413
    %v439 = vpack.c.bf16 %v415, %v415
    %v440 = vpack.c.bf16 %v416, %v416
    %v441 = vpack.c.bf16 %v417, %v417
    %v442 = vpack.c.bf16 %v418, %v418
    %v443 = vpack.c.bf16 %v419, %v419
    %v444 = vpack.c.bf16 %v420, %v420
    %v445 = vpack.c.bf16 %v421, %v421
    %v446 = vpack.c.bf16 %v422, %v422
    %v447 = vpack.c.bf16 %v423, %v423
    %v448 = vpack.c.bf16 %v424, %v424
    %v449 = vpack.c.bf16 %v425, %v425
    %v450 = vpack.c.bf16 %v426, %v426
    %v451 = vpack.c.bf16 %v427, %v427
    %v452 = vpack.c.bf16 %v428, %v428
    %v453 = vpack.c.bf16 %v429, %v429
    %v454 = vpack.c.bf16 %v430, %v430
    %v455 = vpack.c.bf16 %v431, %v431
    %v456 = vpack.c.bf16 %v432, %v432
    %v457 = vpack.c.bf16 %v433, %v433
    %v458 = vpack.c.bf16 %v434, %v434
    %v459 = vpack.c.bf16 %v435, %v435
    %v460 = vpack.c.bf16 %v436, %v436
    %v461 = vpack.c.bf16 %v437, %v437
    %v462 = vpack.c.bf16 %v438, %v438
    %v471 = vunpack.c.l.b16 %v439
    %v472 = vunpack.c.l.b16 %v440
    %v473 = vunpack.c.l.b16 %v441
    %v474 = vunpack.c.l.b16 %v442
    %v475 = vunpack.c.l.b16 %v443
    %v476 = vunpack.c.l.b16 %v444
    %v477 = vunpack.c.l.b16 %v445
    %v478 = vunpack.c.l.b16 %v446
    %v479 = vpack.c.b16 %v472, %v471
    %v480 = vpack.c.b16 %v474, %v473
    %v481 = vpack.c.b16 %v476, %v475
    %v482 = vpack.c.b16 %v478, %v477
    %v495 = vunpack.c.l.b16 %v447
    %v496 = vunpack.c.l.b16 %v448
    %v497 = vunpack.c.l.b16 %v449
    %v498 = vunpack.c.l.b16 %v450
    %v499 = vunpack.c.l.b16 %v451
    %v500 = vunpack.c.l.b16 %v452
    %v501 = vunpack.c.l.b16 %v453
    %v502 = vunpack.c.l.b16 %v454
    %v503 = vpack.c.b16 %v496, %v495
    %v504 = vpack.c.b16 %v498, %v497
    %v505 = vpack.c.b16 %v500, %v499
    %v506 = vpack.c.b16 %v502, %v501
    %v519 = vunpack.c.l.b16 %v455
    %v520 = vunpack.c.l.b16 %v456
    %v521 = vunpack.c.l.b16 %v457
    %v522 = vunpack.c.l.b16 %v458
    %v523 = vunpack.c.l.b16 %v459
    %v524 = vunpack.c.l.b16 %v460
    %v525 = vunpack.c.l.b16 %v461
    %v526 = vunpack.c.l.b16 %v462
    %v527 = vpack.c.b16 %v520, %v519
    %v528 = vpack.c.b16 %v522, %v521
    %v529 = vpack.c.b16 %v524, %v523
    %v530 = vpack.c.b16 %v526, %v525
    %v535 = vld [vmem:[%s3] sm:$0xf]
    %v536 = vld [vmem:[%s3 + $0x4] sm:$0xf]
    %v537 = vld [vmem:[%s3 + $0x8] sm:$0xf]
    %v538 = vld [vmem:[%s3 + $0xc] sm:$0xf]
    %v539 = vld [vmem:[%s3 + $0x10] sm:$0xf]
    %v540 = vld [vmem:[%s3 + $0x14] sm:$0xf]
    %v541 = vld [vmem:[%s3 + $0x18] sm:$0xf]
    %v542 = vld [vmem:[%s3 + $0x1c] sm:$0xf]
    %v543 = vld [vmem:[%s3 + $0x20] sm:$0xf]
    %v544 = vld [vmem:[%s3 + $0x24] sm:$0xf]
    %v545 = vld [vmem:[%s3 + $0x28] sm:$0xf]
    %v546 = vld [vmem:[%s3 + $0x2c] sm:$0xf]
    %v547 = vld [vmem:[%s3 + $0x30] sm:$0xf]
    %v548 = vld [vmem:[%s3 + $0x34] sm:$0xf]
    %v549 = vld [vmem:[%s3 + $0x38] sm:$0xf]
    %v550 = vld [vmem:[%s3 + $0x3c] sm:$0xf]
    %v551 = vld [vmem:[%s3 + $0x40] sm:$0xf]
    %v552 = vld [vmem:[%s3 + $0x44] sm:$0xf]
    %v553 = vld [vmem:[%s3 + $0x48] sm:$0xf]
    %v554 = vld [vmem:[%s3 + $0x4c] sm:$0xf]
    %v555 = vld [vmem:[%s3 + $0x50] sm:$0xf]
    %v556 = vld [vmem:[%s3 + $0x54] sm:$0xf]
    %v557 = vld [vmem:[%s3 + $0x58] sm:$0xf]
    %v558 = vld [vmem:[%s3 + $0x5c] sm:$0xf]
    %v559 = vld [vmem:[%s3 + $0x60] sm:$0xf]
    %v560 = vld [vmem:[%s3 + $0x64] sm:$0xf]
    %v561 = vld [vmem:[%s3 + $0x68] sm:$0xf]
    %v562 = vld [vmem:[%s3 + $0x6c] sm:$0xf]
    %v563 = vld [vmem:[%s3 + $0x70] sm:$0xf]
    %v564 = vld [vmem:[%s3 + $0x74] sm:$0xf]
    %v565 = vld [vmem:[%s3 + $0x78] sm:$0xf]
    %v566 = vld [vmem:[%s3 + $0x7c] sm:$0xf]
    %v567 = vld [vmem:[%s3 + $0x80] sm:$0xf]
    %v568 = vld [vmem:[%s3 + $0x84] sm:$0xf]
    %v569 = vld [vmem:[%s3 + $0x88] sm:$0xf]
    %v570 = vld [vmem:[%s3 + $0x8c] sm:$0xf]
    %v571 = vld [vmem:[%s3 + $0x90] sm:$0xf]
    %v572 = vld [vmem:[%s3 + $0x94] sm:$0xf]
    %v573 = vld [vmem:[%s3 + $0x98] sm:$0xf]
    %v574 = vld [vmem:[%s3 + $0x9c] sm:$0xf]
    %v575 = vld [vmem:[%s3 + $0xa0] sm:$0xf]
    %v576 = vld [vmem:[%s3 + $0xa4] sm:$0xf]
    %v577 = vld [vmem:[%s3 + $0xa8] sm:$0xf]
    %v578 = vld [vmem:[%s3 + $0xac] sm:$0xf]
    %v579 = vld [vmem:[%s3 + $0xb0] sm:$0xf]
    %v580 = vld [vmem:[%s3 + $0xb4] sm:$0xf]
    %v581 = vld [vmem:[%s3 + $0xb8] sm:$0xf]
    %v582 = vld [vmem:[%s3 + $0xbc] sm:$0xf]
    %v583 = vld [vmem:[%s3 + $0xc0] sm:$0xf]
    %v584 = vld [vmem:[%s3 + $0xc4] sm:$0xf]
    %v585 = vld [vmem:[%s3 + $0xc8] sm:$0xf]
    %v586 = vld [vmem:[%s3 + $0xcc] sm:$0xf]
    %v587 = vld [vmem:[%s3 + $0xd0] sm:$0xf]
    %v588 = vld [vmem:[%s3 + $0xd4] sm:$0xf]
    %v589 = vld [vmem:[%s3 + $0xd8] sm:$0xf]
    %v590 = vld [vmem:[%s3 + $0xdc] sm:$0xf]
    %v591 = vld [vmem:[%s3 + $0xe0] sm:$0xf]
    %v592 = vld [vmem:[%s3 + $0xe4] sm:$0xf]
    %v593 = vld [vmem:[%s3 + $0xe8] sm:$0xf]
    %v594 = vld [vmem:[%s3 + $0xec] sm:$0xf]
    %v595 = vld [vmem:[%s3 + $0xf0] sm:$0xf]
    %v596 = vld [vmem:[%s3 + $0xf4] sm:$0xf]
    %v597 = vld [vmem:[%s3 + $0xf8] sm:$0xf]
    %v598 = vld [vmem:[%s3 + $0xfc] sm:$0xf]
    %v599 = vld [vmem:[%s4] sm:$0x1]
    %v601 = vperm.slane %v599, 0
    %v667 = vunpack.c.l.b16 %v535
    %v668 = vunpack.c.l.b16 %v536
    %v669 = vunpack.c.l.b16 %v537
    %v670 = vunpack.c.l.b16 %v538
    %v671 = vunpack.c.l.b16 %v539
    %v672 = vunpack.c.l.b16 %v540
    %v673 = vunpack.c.l.b16 %v541
    %v674 = vunpack.c.l.b16 %v542
    %v675 = vunpack.c.l.b16 %v543
    %v676 = vunpack.c.l.b16 %v544
    %v677 = vunpack.c.l.b16 %v545
    %v678 = vunpack.c.l.b16 %v546
    %v679 = vunpack.c.l.b16 %v547
    %v680 = vunpack.c.l.b16 %v548
    %v681 = vunpack.c.l.b16 %v549
    %v682 = vunpack.c.l.b16 %v550
    %v683 = vunpack.c.l.b16 %v551
    %v684 = vunpack.c.l.b16 %v552
    %v685 = vunpack.c.l.b16 %v553
    %v686 = vunpack.c.l.b16 %v554
    %v687 = vunpack.c.l.b16 %v555
    %v688 = vunpack.c.l.b16 %v556
    %v689 = vunpack.c.l.b16 %v557
    %v690 = vunpack.c.l.b16 %v558
    %v691 = vunpack.c.l.b16 %v559
    %v692 = vunpack.c.l.b16 %v560
    %v693 = vunpack.c.l.b16 %v561
    %v694 = vunpack.c.l.b16 %v562
    %v695 = vunpack.c.l.b16 %v563
    %v696 = vunpack.c.l.b16 %v564
    %v697 = vunpack.c.l.b16 %v565
    %v698 = vunpack.c.l.b16 %v566
    %v699 = vunpack.c.l.b16 %v567
    %v700 = vunpack.c.l.b16 %v568
    %v701 = vunpack.c.l.b16 %v569
    %v702 = vunpack.c.l.b16 %v570
    %v703 = vunpack.c.l.b16 %v571
    %v704 = vunpack.c.l.b16 %v572
    %v705 = vunpack.c.l.b16 %v573
    %v706 = vunpack.c.l.b16 %v574
    %v707 = vunpack.c.l.b16 %v575
    %v708 = vunpack.c.l.b16 %v576
    %v709 = vunpack.c.l.b16 %v577
    %v710 = vunpack.c.l.b16 %v578
    %v711 = vunpack.c.l.b16 %v579
    %v712 = vunpack.c.l.b16 %v580
    %v713 = vunpack.c.l.b16 %v581
    %v714 = vunpack.c.l.b16 %v582
    %v715 = vunpack.c.l.b16 %v583
    %v716 = vunpack.c.l.b16 %v584
    %v717 = vunpack.c.l.b16 %v585
    %v718 = vunpack.c.l.b16 %v586
    %v719 = vunpack.c.l.b16 %v587
    %v720 = vunpack.c.l.b16 %v588
    %v721 = vunpack.c.l.b16 %v589
    %v722 = vunpack.c.l.b16 %v590
    %v723 = vunpack.c.l.b16 %v591
    %v724 = vunpack.c.l.b16 %v592
    %v725 = vunpack.c.l.b16 %v593
    %v726 = vunpack.c.l.b16 %v594
    %v727 = vunpack.c.l.b16 %v595
    %v728 = vunpack.c.l.b16 %v596
    %v729 = vunpack.c.l.b16 %v597
    %v730 = vunpack.c.l.b16 %v598
    %v731 = vpack.c.b16 %v668, %v667
    %v732 = vpack.c.b16 %v670, %v669
    %v733 = vpack.c.b16 %v672, %v671
    %v734 = vpack.c.b16 %v674, %v673
    %v735 = vpack.c.b16 %v676, %v675
    %v736 = vpack.c.b16 %v678, %v677
    %v737 = vpack.c.b16 %v680, %v679
    %v738 = vpack.c.b16 %v682, %v681
    %v739 = vpack.c.b16 %v684, %v683
    %v740 = vpack.c.b16 %v686, %v685
    %v741 = vpack.c.b16 %v688, %v687
    %v742 = vpack.c.b16 %v690, %v689
    %v743 = vpack.c.b16 %v692, %v691
    %v744 = vpack.c.b16 %v694, %v693
    %v745 = vpack.c.b16 %v696, %v695
    %v746 = vpack.c.b16 %v698, %v697
    %v747 = vpack.c.b16 %v700, %v699
    %v748 = vpack.c.b16 %v702, %v701
    %v749 = vpack.c.b16 %v704, %v703
    %v750 = vpack.c.b16 %v706, %v705
    %v751 = vpack.c.b16 %v708, %v707
    %v752 = vpack.c.b16 %v710, %v709
    %v753 = vpack.c.b16 %v712, %v711
    %v754 = vpack.c.b16 %v714, %v713
    %v755 = vpack.c.b16 %v716, %v715
    %v756 = vpack.c.b16 %v718, %v717
    %v757 = vpack.c.b16 %v720, %v719
    %v758 = vpack.c.b16 %v722, %v721
    %v759 = vpack.c.b16 %v724, %v723
    %v760 = vpack.c.b16 %v726, %v725
    %v761 = vpack.c.b16 %v728, %v727
    %v762 = vpack.c.b16 %v730, %v729
    %795 = vmatpush.bf16.msra.mxu0 %v738
    %796 = vmatpush.bf16.msra.mxu0 %v737
    %797 = vmatpush.bf16.msra.mxu0 %v736
    %798 = vmatpush.bf16.msra.mxu0 %v735
    %799 = vmatpush.bf16.msra.mxu0 %v734
    %800 = vmatpush.bf16.msra.mxu0 %v733
    %801 = vmatpush.bf16.msra.mxu0 %v732
    %802 = vmatpush.bf16.msra.mxu0 %v731
    %803 = vmatmul.bf16.gmra.mxu0 %v181
    %v804 = vpop.f32.mrf.mxu0
    %v805 = vadd.f32 %v601, %v804
    %v806 = vpop.f32.mrf.mxu0
    %v807 = vadd.f32 %v601, %v806
    %808 = vmatmul.bf16.gmra.mxu0 %v182
    %v809 = vpop.f32.mrf.mxu0
    %v810 = vadd.f32 %v601, %v809
    %v811 = vpop.f32.mrf.mxu0
    %v812 = vadd.f32 %v601, %v811
    %813 = vmatmul.bf16.gmra.mxu0 %v183
    %v814 = vpop.f32.mrf.mxu0
    %v815 = vadd.f32 %v601, %v814
    %v816 = vpop.f32.mrf.mxu0
    %v817 = vadd.f32 %v601, %v816
    %818 = vmatmul.bf16.gmra.mxu0 %v184
    %v819 = vpop.f32.mrf.mxu0
    %v820 = vadd.f32 %v601, %v819
    %v821 = vpop.f32.mrf.mxu0
    %v822 = vadd.f32 %v601, %v821
    %823 = vdwg.mxu0
    %824 = vmatpush.bf16.msra.mxu0 %v746
    %825 = vmatpush.bf16.msra.mxu0 %v745
    %826 = vmatpush.bf16.msra.mxu0 %v744
    %827 = vmatpush.bf16.msra.mxu0 %v743
    %828 = vmatpush.bf16.msra.mxu0 %v742
    %829 = vmatpush.bf16.msra.mxu0 %v741
    %830 = vmatpush.bf16.msra.mxu0 %v740
    %831 = vmatpush.bf16.msra.mxu0 %v739
    %832 = vmatmul.bf16.gmra.mxu0 %v479
    %v833 = vpop.f32.mrf.mxu0
    %v834 = vadd.f32 %v805, %v833
    %v835 = vpop.f32.mrf.mxu0
    %v836 = vadd.f32 %v807, %v835
    %837 = vmatmul.bf16.gmra.mxu0 %v480
    %v838 = vpop.f32.mrf.mxu0
    %v839 = vadd.f32 %v810, %v838
    %v840 = vpop.f32.mrf.mxu0
    %v841 = vadd.f32 %v812, %v840
    %842 = vmatmul.bf16.gmra.mxu0 %v481
    %v843 = vpop.f32.mrf.mxu0
    %v844 = vadd.f32 %v815, %v843
    %v845 = vpop.f32.mrf.mxu0
    %v846 = vadd.f32 %v817, %v845
    %847 = vmatmul.bf16.gmra.mxu0 %v482
    %v848 = vpop.f32.mrf.mxu0
    %v849 = vadd.f32 %v820, %v848
    %v850 = vpop.f32.mrf.mxu0
    %v851 = vadd.f32 %v822, %v850
    %852 = vdwg.mxu0
    %853 = vmatpush.bf16.msra.mxu0 %v754
    %854 = vmatpush.bf16.msra.mxu0 %v753
    %855 = vmatpush.bf16.msra.mxu0 %v752
    %856 = vmatpush.bf16.msra.mxu0 %v751
    %857 = vmatpush.bf16.msra.mxu0 %v750
    %858 = vmatpush.bf16.msra.mxu0 %v749
    %859 = vmatpush.bf16.msra.mxu0 %v748
    %860 = vmatpush.bf16.msra.mxu0 %v747
    %861 = vmatmul.bf16.gmra.mxu0 %v503
    %v862 = vpop.f32.mrf.mxu0
    %v863 = vadd.f32 %v834, %v862
    %v864 = vpop.f32.mrf.mxu0
    %v865 = vadd.f32 %v836, %v864
    %866 = vmatmul.bf16.gmra.mxu0 %v504
    %v867 = vpop.f32.mrf.mxu0
    %v868 = vadd.f32 %v839, %v867
    %v869 = vpop.f32.mrf.mxu0
    %v870 = vadd.f32 %v841, %v869
    %871 = vmatmul.bf16.gmra.mxu0 %v505
    %v872 = vpop.f32.mrf.mxu0
    %v873 = vadd.f32 %v844, %v872
    %v874 = vpop.f32.mrf.mxu0
    %v875 = vadd.f32 %v846, %v874
    %876 = vmatmul.bf16.gmra.mxu0 %v506
    %v877 = vpop.f32.mrf.mxu0
    %v878 = vadd.f32 %v849, %v877
    %v879 = vpop.f32.mrf.mxu0
    %v880 = vadd.f32 %v851, %v879
    %881 = vdwg.mxu0
    %882 = vmatpush.bf16.msra.mxu0 %v762
    %883 = vmatpush.bf16.msra.mxu0 %v761
    %884 = vmatpush.bf16.msra.mxu0 %v760
    %885 = vmatpush.bf16.msra.mxu0 %v759
    %886 = vmatpush.bf16.msra.mxu0 %v758
    %887 = vmatpush.bf16.msra.mxu0 %v757
    %888 = vmatpush.bf16.msra.mxu0 %v756
    %889 = vmatpush.bf16.msra.mxu0 %v755
    %890 = vmatmul.bf16.gmra.mxu0 %v527
    %v891 = vpop.f32.mrf.mxu0
    %v892 = vadd.f32 %v863, %v891
    %v893 = vpop.f32.mrf.mxu0
    %v894 = vadd.f32 %v865, %v893
    %895 = vmatmul.bf16.gmra.mxu0 %v528
    %v896 = vpop.f32.mrf.mxu0
    %v897 = vadd.f32 %v868, %v896
    %v898 = vpop.f32.mrf.mxu0
    %v899 = vadd.f32 %v870, %v898
    %900 = vmatmul.bf16.gmra.mxu0 %v529
    %v901 = vpop.f32.mrf.mxu0
    %v902 = vadd.f32 %v873, %v901
    %v903 = vpop.f32.mrf.mxu0
    %v904 = vadd.f32 %v875, %v903
    %905 = vmatmul.bf16.gmra.mxu0 %v530
    %v906 = vpop.f32.mrf.mxu0
    %v907 = vadd.f32 %v878, %v906
    %v908 = vpop.f32.mrf.mxu0
    %v909 = vadd.f32 %v880, %v908
    %910 = vdwg.mxu0
    %v911 = vmax.f32 %v892, 0.0
    %v912 = vmax.f32 %v894, 0.0
    %v913 = vmax.f32 %v897, 0.0
    %v914 = vmax.f32 %v899, 0.0
    %v915 = vmax.f32 %v902, 0.0
    %v916 = vmax.f32 %v904, 0.0
    %v917 = vmax.f32 %v907, 0.0
    %v918 = vmax.f32 %v909, 0.0
    %v919 = vpack.c.bf16 %v911, %v911
    %v920 = vpack.c.bf16 %v912, %v912
    %v921 = vpack.c.bf16 %v913, %v913
    %v922 = vpack.c.bf16 %v914, %v914
    %v923 = vpack.c.bf16 %v915, %v915
    %v924 = vpack.c.bf16 %v916, %v916
    %v925 = vpack.c.bf16 %v917, %v917
    %v926 = vpack.c.bf16 %v918, %v918
    %v935 = vunpack.c.l.b16 %v919
    %v936 = vunpack.c.l.b16 %v920
    %v937 = vunpack.c.l.b16 %v921
    %v938 = vunpack.c.l.b16 %v922
    %v939 = vunpack.c.l.b16 %v923
    %v940 = vunpack.c.l.b16 %v924
    %v941 = vunpack.c.l.b16 %v925
    %v942 = vunpack.c.l.b16 %v926
    %v943 = vpack.c.b16 %v936, %v935
    %v944 = vpack.c.b16 %v938, %v937
    %v945 = vpack.c.b16 %v940, %v939
    %v946 = vpack.c.b16 %v942, %v941
    %951 = vmatpush.bf16.msra.mxu0 0
    %952 = vmatpush.bf16.msra.mxu0 0
    %953 = vmatpush.bf16.msra.mxu0 0
    %954 = vmatpush.bf16.msra.mxu0 0
    %955 = vmatpush.bf16.msra.mxu0 %v946
    %956 = vmatpush.bf16.msra.mxu0 %v945
    %957 = vmatpush.bf16.msra.mxu0 %v944
    %958 = vmatpush.bf16.msra.mxu0 %v943
    %959 = vmatmul.bf16.gmra.mxu0 %v191
    %v960 = vpop.f32.mrf.mxu0
    %v961 = vadd.f32 0.0, %v960
    %v962 = vpop.f32.mrf.mxu0
    %v963 = vadd.f32 0.0, %v962
    %964 = vmatmul.bf16.gmra.mxu0 %v194
    %v965 = vpop.f32.mrf.mxu0
    %v966 = vadd.f32 0.0, %v965
    %v967 = vpop.f32.mrf.mxu0
    %v968 = vadd.f32 0.0, %v967
    %969 = vmatmul.bf16.gmra.mxu0 %v197
    %v970 = vpop.f32.mrf.mxu0
    %v971 = vadd.f32 0.0, %v970
    %v972 = vpop.f32.mrf.mxu0
    %v973 = vadd.f32 0.0, %v972
    %974 = vmatmul.bf16.gmra.mxu0 %v200
    %v975 = vpop.f32.mrf.mxu0
    %v976 = vadd.f32 0.0, %v975
    %v977 = vpop.f32.mrf.mxu0
    %v978 = vadd.f32 0.0, %v977
    %979 = vmatmul.bf16.gmra.mxu0 %v203
    %v980 = vpop.f32.mrf.mxu0
    %v981 = vadd.f32 0.0, %v980
    %v982 = vpop.f32.mrf.mxu0
    %v983 = vadd.f32 0.0, %v982
    %984 = vmatmul.bf16.gmra.mxu0 %v206
    %v985 = vpop.f32.mrf.mxu0
    %v986 = vadd.f32 0.0, %v985
    %v987 = vpop.f32.mrf.mxu0
    %v988 = vadd.f32 0.0, %v987
    %989 = vmatmul.bf16.gmra.mxu0 %v209
    %v990 = vpop.f32.mrf.mxu0
    %v991 = vadd.f32 0.0, %v990
    %v992 = vpop.f32.mrf.mxu0
    %v993 = vadd.f32 0.0, %v992
    %994 = vmatmul.bf16.gmra.mxu0 %v212
    %v995 = vpop.f32.mrf.mxu0
    %v996 = vadd.f32 0.0, %v995
    %v997 = vpop.f32.mrf.mxu0
    %v998 = vadd.f32 0.0, %v997
    %999 = vmatmul.bf16.gmra.mxu0 %v215
    %v1000 = vpop.f32.mrf.mxu0
    %v1001 = vadd.f32 0.0, %v1000
    %v1002 = vpop.f32.mrf.mxu0
    %v1003 = vadd.f32 0.0, %v1002
    %1004 = vmatmul.bf16.gmra.mxu0 %v218
    %v1005 = vpop.f32.mrf.mxu0
    %v1006 = vadd.f32 0.0, %v1005
    %v1007 = vpop.f32.mrf.mxu0
    %v1008 = vadd.f32 0.0, %v1007
    %1009 = vmatmul.bf16.gmra.mxu0 %v221
    %v1010 = vpop.f32.mrf.mxu0
    %v1011 = vadd.f32 0.0, %v1010
    %v1012 = vpop.f32.mrf.mxu0
    %v1013 = vadd.f32 0.0, %v1012
    %1014 = vmatmul.bf16.gmra.mxu0 %v224
    %v1015 = vpop.f32.mrf.mxu0
    %v1016 = vadd.f32 0.0, %v1015
    %v1017 = vpop.f32.mrf.mxu0
    %v1018 = vadd.f32 0.0, %v1017
    %1019 = vdwg.mxu0
    %v1020 = vmul.f32 %v961, %v298
    %v1021 = vmul.f32 %v963, %v303
    %v1022 = vmul.f32 %v966, %v308
    %v1023 = vmul.f32 %v968, %v313
    %v1024 = vmul.f32 %v971, %v318
    %v1025 = vmul.f32 %v973, %v323
    %v1026 = vmul.f32 %v976, %v328
    %v1027 = vmul.f32 %v978, %v333
    %v1028 = vmul.f32 %v981, %v338
    %v1029 = vmul.f32 %v983, %v343
    %v1030 = vmul.f32 %v986, %v348
    %v1031 = vmul.f32 %v988, %v353
    %v1032 = vmul.f32 %v991, %v358
    %v1033 = vmul.f32 %v993, %v363
    %v1034 = vmul.f32 %v996, %v368
    %v1035 = vmul.f32 %v998, %v373
    %v1036 = vmul.f32 %v1001, %v378
    %v1037 = vmul.f32 %v1003, %v383
    %v1038 = vmul.f32 %v1006, %v388
    %v1039 = vmul.f32 %v1008, %v393
    %v1040 = vmul.f32 %v1011, %v398
    %v1041 = vmul.f32 %v1013, %v403
    %v1042 = vmul.f32 %v1016, %v408
    %v1043 = vmul.f32 %v1018, %v413
    %v1044 = vpack.c.bf16 %v1020, %v1020
    %v1045 = vpack.c.bf16 %v1021, %v1021
    %v1046 = vpack.c.bf16 %v1022, %v1022
    %v1047 = vpack.c.bf16 %v1023, %v1023
    %v1048 = vpack.c.bf16 %v1024, %v1024
    %v1049 = vpack.c.bf16 %v1025, %v1025
    %v1050 = vpack.c.bf16 %v1026, %v1026
    %v1051 = vpack.c.bf16 %v1027, %v1027
    %v1052 = vpack.c.bf16 %v1028, %v1028
    %v1053 = vpack.c.bf16 %v1029, %v1029
    %v1054 = vpack.c.bf16 %v1030, %v1030
    %v1055 = vpack.c.bf16 %v1031, %v1031
    %v1056 = vpack.c.bf16 %v1032, %v1032
    %v1057 = vpack.c.bf16 %v1033, %v1033
    %v1058 = vpack.c.bf16 %v1034, %v1034
    %v1059 = vpack.c.bf16 %v1035, %v1035
    %v1060 = vpack.c.bf16 %v1036, %v1036
    %v1061 = vpack.c.bf16 %v1037, %v1037
    %v1062 = vpack.c.bf16 %v1038, %v1038
    %v1063 = vpack.c.bf16 %v1039, %v1039
    %v1064 = vpack.c.bf16 %v1040, %v1040
    %v1065 = vpack.c.bf16 %v1041, %v1041
    %v1066 = vpack.c.bf16 %v1042, %v1042
    %v1067 = vpack.c.bf16 %v1043, %v1043
    %v1076 = vunpack.c.l.b16 %v1044
    %v1077 = vunpack.c.l.b16 %v1045
    %v1078 = vunpack.c.l.b16 %v1046
    %v1079 = vunpack.c.l.b16 %v1047
    %v1080 = vunpack.c.l.b16 %v1048
    %v1081 = vunpack.c.l.b16 %v1049
    %v1082 = vunpack.c.l.b16 %v1050
    %v1083 = vunpack.c.l.b16 %v1051
    %v1084 = vpack.c.b16 %v1077, %v1076
    %v1085 = vpack.c.b16 %v1079, %v1078
    %v1086 = vpack.c.b16 %v1081, %v1080
    %v1087 = vpack.c.b16 %v1083, %v1082
    %v1100 = vunpack.c.l.b16 %v1052
    %v1101 = vunpack.c.l.b16 %v1053
    %v1102 = vunpack.c.l.b16 %v1054
    %v1103 = vunpack.c.l.b16 %v1055
    %v1104 = vunpack.c.l.b16 %v1056
    %v1105 = vunpack.c.l.b16 %v1057
    %v1106 = vunpack.c.l.b16 %v1058
    %v1107 = vunpack.c.l.b16 %v1059
    %v1108 = vpack.c.b16 %v1101, %v1100
    %v1109 = vpack.c.b16 %v1103, %v1102
    %v1110 = vpack.c.b16 %v1105, %v1104
    %v1111 = vpack.c.b16 %v1107, %v1106
    %v1124 = vunpack.c.l.b16 %v1060
    %v1125 = vunpack.c.l.b16 %v1061
    %v1126 = vunpack.c.l.b16 %v1062
    %v1127 = vunpack.c.l.b16 %v1063
    %v1128 = vunpack.c.l.b16 %v1064
    %v1129 = vunpack.c.l.b16 %v1065
    %v1130 = vunpack.c.l.b16 %v1066
    %v1131 = vunpack.c.l.b16 %v1067
    %v1132 = vpack.c.b16 %v1125, %v1124
    %v1133 = vpack.c.b16 %v1127, %v1126
    %v1134 = vpack.c.b16 %v1129, %v1128
    %v1135 = vpack.c.b16 %v1131, %v1130
    %v1140 = vld [vmem:[#allocation2] sm:$0xf]
    %v1141 = vld [vmem:[#allocation2 + $0x4] sm:$0xf]
    %v1142 = vld [vmem:[#allocation2 + $0x8] sm:$0xf]
    %v1143 = vld [vmem:[#allocation2 + $0xc] sm:$0xf]
    %v1144 = vld [vmem:[#allocation2 + $0x10] sm:$0xf]
    %v1145 = vld [vmem:[#allocation2 + $0x14] sm:$0xf]
    %v1146 = vld [vmem:[#allocation2 + $0x18] sm:$0xf]
    %v1147 = vld [vmem:[#allocation2 + $0x1c] sm:$0xf]
    %v1148 = vld [vmem:[#allocation2 + $0x20] sm:$0xf]
    %v1149 = vld [vmem:[#allocation2 + $0x24] sm:$0xf]
    %v1150 = vld [vmem:[#allocation2 + $0x28] sm:$0xf]
    %v1151 = vld [vmem:[#allocation2 + $0x2c] sm:$0xf]
    %v1152 = vld [vmem:[#allocation2 + $0x30] sm:$0xf]
    %v1153 = vld [vmem:[#allocation2 + $0x34] sm:$0xf]
    %v1154 = vld [vmem:[#allocation2 + $0x38] sm:$0xf]
    %v1155 = vld [vmem:[#allocation2 + $0x3c] sm:$0xf]
    %v1156 = vld [vmem:[#allocation2 + $0x40] sm:$0xf]
    %v1157 = vld [vmem:[#allocation2 + $0x44] sm:$0xf]
    %v1158 = vld [vmem:[#allocation2 + $0x48] sm:$0xf]
    %v1159 = vld [vmem:[#allocation2 + $0x4c] sm:$0xf]
    %v1160 = vld [vmem:[#allocation2 + $0x50] sm:$0xf]
    %v1161 = vld [vmem:[#allocation2 + $0x54] sm:$0xf]
    %v1162 = vld [vmem:[#allocation2 + $0x58] sm:$0xf]
    %v1163 = vld [vmem:[#allocation2 + $0x5c] sm:$0xf]
    %v1164 = vld [vmem:[#allocation2 + $0x60] sm:$0xf]
    %v1165 = vld [vmem:[#allocation2 + $0x64] sm:$0xf]
    %v1166 = vld [vmem:[#allocation2 + $0x68] sm:$0xf]
    %v1167 = vld [vmem:[#allocation2 + $0x6c] sm:$0xf]
    %v1168 = vld [vmem:[#allocation2 + $0x70] sm:$0xf]
    %v1169 = vld [vmem:[#allocation2 + $0x74] sm:$0xf]
    %v1170 = vld [vmem:[#allocation2 + $0x78] sm:$0xf]
    %v1171 = vld [vmem:[#allocation2 + $0x7c] sm:$0xf]
    %v1172 = vld [vmem:[#allocation2 + $0x80] sm:$0xf]
    %v1173 = vld [vmem:[#allocation2 + $0x84] sm:$0xf]
    %v1174 = vld [vmem:[#allocation2 + $0x88] sm:$0xf]
    %v1175 = vld [vmem:[#allocation2 + $0x8c] sm:$0xf]
    %v1176 = vld [vmem:[#allocation2 + $0x90] sm:$0xf]
    %v1177 = vld [vmem:[#allocation2 + $0x94] sm:$0xf]
    %v1178 = vld [vmem:[#allocation2 + $0x98] sm:$0xf]
    %v1179 = vld [vmem:[#allocation2 + $0x9c] sm:$0xf]
    %v1180 = vld [vmem:[#allocation2 + $0xa0] sm:$0xf]
    %v1181 = vld [vmem:[#allocation2 + $0xa4] sm:$0xf]
    %v1182 = vld [vmem:[#allocation2 + $0xa8] sm:$0xf]
    %v1183 = vld [vmem:[#allocation2 + $0xac] sm:$0xf]
    %v1184 = vld [vmem:[#allocation2 + $0xb0] sm:$0xf]
    %v1185 = vld [vmem:[#allocation2 + $0xb4] sm:$0xf]
    %v1186 = vld [vmem:[#allocation2 + $0xb8] sm:$0xf]
    %v1187 = vld [vmem:[#allocation2 + $0xbc] sm:$0xf]
    %v1188 = vld [vmem:[#allocation2 + $0xc0] sm:$0xf]
    %v1189 = vld [vmem:[#allocation2 + $0xc4] sm:$0xf]
    %v1190 = vld [vmem:[#allocation2 + $0xc8] sm:$0xf]
    %v1191 = vld [vmem:[#allocation2 + $0xcc] sm:$0xf]
    %v1192 = vld [vmem:[#allocation2 + $0xd0] sm:$0xf]
    %v1193 = vld [vmem:[#allocation2 + $0xd4] sm:$0xf]
    %v1194 = vld [vmem:[#allocation2 + $0xd8] sm:$0xf]
    %v1195 = vld [vmem:[#allocation2 + $0xdc] sm:$0xf]
    %v1196 = vld [vmem:[#allocation2 + $0xe0] sm:$0xf]
    %v1197 = vld [vmem:[#allocation2 + $0xe4] sm:$0xf]
    %v1198 = vld [vmem:[#allocation2 + $0xe8] sm:$0xf]
    %v1199 = vld [vmem:[#allocation2 + $0xec] sm:$0xf]
    %v1200 = vld [vmem:[#allocation2 + $0xf0] sm:$0xf]
    %v1201 = vld [vmem:[#allocation2 + $0xf4] sm:$0xf]
    %v1202 = vld [vmem:[#allocation2 + $0xf8] sm:$0xf]
    %v1203 = vld [vmem:[#allocation2 + $0xfc] sm:$0xf]
    %v1204 = vld [vmem:[%s6] sm:$0x1]
    %v1206 = vperm.slane %v1204, 0
    %v1272 = vunpack.c.l.b16 %v1140
    %v1273 = vunpack.c.l.b16 %v1141
    %v1274 = vunpack.c.l.b16 %v1142
    %v1275 = vunpack.c.l.b16 %v1143
    %v1276 = vunpack.c.l.b16 %v1144
    %v1277 = vunpack.c.l.b16 %v1145
    %v1278 = vunpack.c.l.b16 %v1146
    %v1279 = vunpack.c.l.b16 %v1147
    %v1280 = vunpack.c.l.b16 %v1148
    %v1281 = vunpack.c.l.b16 %v1149
    %v1282 = vunpack.c.l.b16 %v1150
    %v1283 = vunpack.c.l.b16 %v1151
    %v1284 = vunpack.c.l.b16 %v1152
    %v1285 = vunpack.c.l.b16 %v1153
    %v1286 = vunpack.c.l.b16 %v1154
    %v1287 = vunpack.c.l.b16 %v1155
    %v1288 = vunpack.c.l.b16 %v1156
    %v1289 = vunpack.c.l.b16 %v1157
    %v1290 = vunpack.c.l.b16 %v1158
    %v1291 = vunpack.c.l.b16 %v1159
    %v1292 = vunpack.c.l.b16 %v1160
    %v1293 = vunpack.c.l.b16 %v1161
    %v1294 = vunpack.c.l.b16 %v1162
    %v1295 = vunpack.c.l.b16 %v1163
    %v1296 = vunpack.c.l.b16 %v1164
    %v1297 = vunpack.c.l.b16 %v1165
    %v1298 = vunpack.c.l.b16 %v1166
    %v1299 = vunpack.c.l.b16 %v1167
    %v1300 = vunpack.c.l.b16 %v1168
    %v1301 = vunpack.c.l.b16 %v1169
    %v1302 = vunpack.c.l.b16 %v1170
    %v1303 = vunpack.c.l.b16 %v1171
    %v1304 = vunpack.c.l.b16 %v1172
    %v1305 = vunpack.c.l.b16 %v1173
    %v1306 = vunpack.c.l.b16 %v1174
    %v1307 = vunpack.c.l.b16 %v1175
    %v1308 = vunpack.c.l.b16 %v1176
    %v1309 = vunpack.c.l.b16 %v1177
    %v1310 = vunpack.c.l.b16 %v1178
    %v1311 = vunpack.c.l.b16 %v1179
    %v1312 = vunpack.c.l.b16 %v1180
    %v1313 = vunpack.c.l.b16 %v1181
    %v1314 = vunpack.c.l.b16 %v1182
    %v1315 = vunpack.c.l.b16 %v1183
    %v1316 = vunpack.c.l.b16 %v1184
    %v1317 = vunpack.c.l.b16 %v1185
    %v1318 = vunpack.c.l.b16 %v1186
    %v1319 = vunpack.c.l.b16 %v1187
    %v1320 = vunpack.c.l.b16 %v1188
    %v1321 = vunpack.c.l.b16 %v1189
    %v1322 = vunpack.c.l.b16 %v1190
    %v1323 = vunpack.c.l.b16 %v1191
    %v1324 = vunpack.c.l.b16 %v1192
    %v1325 = vunpack.c.l.b16 %v1193
    %v1326 = vunpack.c.l.b16 %v1194
    %v1327 = vunpack.c.l.b16 %v1195
    %v1328 = vunpack.c.l.b16 %v1196
    %v1329 = vunpack.c.l.b16 %v1197
    %v1330 = vunpack.c.l.b16 %v1198
    %v1331 = vunpack.c.l.b16 %v1199
    %v1332 = vunpack.c.l.b16 %v1200
    %v1333 = vunpack.c.l.b16 %v1201
    %v1334 = vunpack.c.l.b16 %v1202
    %v1335 = vunpack.c.l.b16 %v1203
    %v1336 = vpack.c.b16 %v1273, %v1272
    %v1337 = vpack.c.b16 %v1275, %v1274
    %v1338 = vpack.c.b16 %v1277, %v1276
    %v1339 = vpack.c.b16 %v1279, %v1278
    %v1340 = vpack.c.b16 %v1281, %v1280
    %v1341 = vpack.c.b16 %v1283, %v1282
    %v1342 = vpack.c.b16 %v1285, %v1284
    %v1343 = vpack.c.b16 %v1287, %v1286
    %v1344 = vpack.c.b16 %v1289, %v1288
    %v1345 = vpack.c.b16 %v1291, %v1290
    %v1346 = vpack.c.b16 %v1293, %v1292
    %v1347 = vpack.c.b16 %v1295, %v1294
    %v1348 = vpack.c.b16 %v1297, %v1296
    %v1349 = vpack.c.b16 %v1299, %v1298
    %v1350 = vpack.c.b16 %v1301, %v1300
    %v1351 = vpack.c.b16 %v1303, %v1302
    %v1352 = vpack.c.b16 %v1305, %v1304
    %v1353 = vpack.c.b16 %v1307, %v1306
    %v1354 = vpack.c.b16 %v1309, %v1308
    %v1355 = vpack.c.b16 %v1311, %v1310
    %v1356 = vpack.c.b16 %v1313, %v1312
    %v1357 = vpack.c.b16 %v1315, %v1314
    %v1358 = vpack.c.b16 %v1317, %v1316
    %v1359 = vpack.c.b16 %v1319, %v1318
    %v1360 = vpack.c.b16 %v1321, %v1320
    %v1361 = vpack.c.b16 %v1323, %v1322
    %v1362 = vpack.c.b16 %v1325, %v1324
    %v1363 = vpack.c.b16 %v1327, %v1326
    %v1364 = vpack.c.b16 %v1329, %v1328
    %v1365 = vpack.c.b16 %v1331, %v1330
    %v1366 = vpack.c.b16 %v1333, %v1332
    %v1367 = vpack.c.b16 %v1335, %v1334
    %1400 = vmatpush.bf16.msra.mxu0 %v1343
    %1401 = vmatpush.bf16.msra.mxu0 %v1342
    %1402 = vmatpush.bf16.msra.mxu0 %v1341
    %1403 = vmatpush.bf16.msra.mxu0 %v1340
    %1404 = vmatpush.bf16.msra.mxu0 %v1339
    %1405 = vmatpush.bf16.msra.mxu0 %v1338
    %1406 = vmatpush.bf16.msra.mxu0 %v1337
    %1407 = vmatpush.bf16.msra.mxu0 %v1336
    %1408 = vmatmul.bf16.gmra.mxu0 %v943
    %v1409 = vpop.f32.mrf.mxu0
    %v1410 = vadd.f32 %v1206, %v1409
    %v1411 = vpop.f32.mrf.mxu0
    %v1412 = vadd.f32 %v1206, %v1411
    %1413 = vmatmul.bf16.gmra.mxu0 %v944
    %v1414 = vpop.f32.mrf.mxu0
    %v1415 = vadd.f32 %v1206, %v1414
    %v1416 = vpop.f32.mrf.mxu0
    %v1417 = vadd.f32 %v1206, %v1416
    %1418 = vmatmul.bf16.gmra.mxu0 %v945
    %v1419 = vpop.f32.mrf.mxu0
    %v1420 = vadd.f32 %v1206, %v1419
    %v1421 = vpop.f32.mrf.mxu0
    %v1422 = vadd.f32 %v1206, %v1421
    %1423 = vmatmul.bf16.gmra.mxu0 %v946
    %v1424 = vpop.f32.mrf.mxu0
    %v1425 = vadd.f32 %v1206, %v1424
    %v1426 = vpop.f32.mrf.mxu0
    %v1427 = vadd.f32 %v1206, %v1426
    %1428 = vdwg.mxu0
    %1429 = vmatpush.bf16.msra.mxu0 %v1351
    %1430 = vmatpush.bf16.msra.mxu0 %v1350
    %1431 = vmatpush.bf16.msra.mxu0 %v1349
    %1432 = vmatpush.bf16.msra.mxu0 %v1348
    %1433 = vmatpush.bf16.msra.mxu0 %v1347
    %1434 = vmatpush.bf16.msra.mxu0 %v1346
    %1435 = vmatpush.bf16.msra.mxu0 %v1345
    %1436 = vmatpush.bf16.msra.mxu0 %v1344
    %1437 = vmatmul.bf16.gmra.mxu0 %v1084
    %v1438 = vpop.f32.mrf.mxu0
    %v1439 = vadd.f32 %v1410, %v1438
    %v1440 = vpop.f32.mrf.mxu0
    %v1441 = vadd.f32 %v1412, %v1440
    %1442 = vmatmul.bf16.gmra.mxu0 %v1085
    %v1443 = vpop.f32.mrf.mxu0
    %v1444 = vadd.f32 %v1415, %v1443
    %v1445 = vpop.f32.mrf.mxu0
    %v1446 = vadd.f32 %v1417, %v1445
    %1447 = vmatmul.bf16.gmra.mxu0 %v1086
    %v1448 = vpop.f32.mrf.mxu0
    %v1449 = vadd.f32 %v1420, %v1448
    %v1450 = vpop.f32.mrf.mxu0
    %v1451 = vadd.f32 %v1422, %v1450
    %1452 = vmatmul.bf16.gmra.mxu0 %v1087
    %v1453 = vpop.f32.mrf.mxu0
    %v1454 = vadd.f32 %v1425, %v1453
    %v1455 = vpop.f32.mrf.mxu0
    %v1456 = vadd.f32 %v1427, %v1455
    %1457 = vdwg.mxu0
    %1458 = vmatpush.bf16.msra.mxu0 %v1359
    %1459 = vmatpush.bf16.msra.mxu0 %v1358
    %1460 = vmatpush.bf16.msra.mxu0 %v1357
    %1461 = vmatpush.bf16.msra.mxu0 %v1356
    %1462 = vmatpush.bf16.msra.mxu0 %v1355
    %1463 = vmatpush.bf16.msra.mxu0 %v1354
    %1464 = vmatpush.bf16.msra.mxu0 %v1353
    %1465 = vmatpush.bf16.msra.mxu0 %v1352
    %1466 = vmatmul.bf16.gmra.mxu0 %v1108
    %v1467 = vpop.f32.mrf.mxu0
    %v1468 = vadd.f32 %v1439, %v1467
    %v1469 = vpop.f32.mrf.mxu0
    %v1470 = vadd.f32 %v1441, %v1469
    %1471 = vmatmul.bf16.gmra.mxu0 %v1109
    %v1472 = vpop.f32.mrf.mxu0
    %v1473 = vadd.f32 %v1444, %v1472
    %v1474 = vpop.f32.mrf.mxu0
    %v1475 = vadd.f32 %v1446, %v1474
    %1476 = vmatmul.bf16.gmra.mxu0 %v1110
    %v1477 = vpop.f32.mrf.mxu0
    %v1478 = vadd.f32 %v1449, %v1477
    %v1479 = vpop.f32.mrf.mxu0
    %v1480 = vadd.f32 %v1451, %v1479
    %1481 = vmatmul.bf16.gmra.mxu0 %v1111
    %v1482 = vpop.f32.mrf.mxu0
    %v1483 = vadd.f32 %v1454, %v1482
    %v1484 = vpop.f32.mrf.mxu0
    %v1485 = vadd.f32 %v1456, %v1484
    %1486 = vdwg.mxu0
    %1487 = vmatpush.bf16.msra.mxu0 %v1367
    %1488 = vmatpush.bf16.msra.mxu0 %v1366
    %1489 = vmatpush.bf16.msra.mxu0 %v1365
    %1490 = vmatpush.bf16.msra.mxu0 %v1364
    %1491 = vmatpush.bf16.msra.mxu0 %v1363
    %1492 = vmatpush.bf16.msra.mxu0 %v1362
    %1493 = vmatpush.bf16.msra.mxu0 %v1361
    %1494 = vmatpush.bf16.msra.mxu0 %v1360
    %1495 = vmatmul.bf16.gmra.mxu0 %v1132
    %v1496 = vpop.f32.mrf.mxu0
    %v1497 = vadd.f32 %v1468, %v1496
    %v1498 = vpop.f32.mrf.mxu0
    %v1499 = vadd.f32 %v1470, %v1498
    %1500 = vmatmul.bf16.gmra.mxu0 %v1133
    %v1501 = vpop.f32.mrf.mxu0
    %v1502 = vadd.f32 %v1473, %v1501
    %v1503 = vpop.f32.mrf.mxu0
    %v1504 = vadd.f32 %v1475, %v1503
    %1505 = vmatmul.bf16.gmra.mxu0 %v1134
    %v1506 = vpop.f32.mrf.mxu0
    %v1507 = vadd.f32 %v1478, %v1506
    %v1508 = vpop.f32.mrf.mxu0
    %v1509 = vadd.f32 %v1480, %v1508
    %1510 = vmatmul.bf16.gmra.mxu0 %v1135
    %v1511 = vpop.f32.mrf.mxu0
    %v1512 = vadd.f32 %v1483, %v1511
    %v1513 = vpop.f32.mrf.mxu0
    %v1514 = vadd.f32 %v1485, %v1513
    %1515 = vdwg.mxu0
    %v1516 = vpack.c.bf16 %v1499, %v1497
    %v1517 = vpack.c.bf16 %v1504, %v1502
    %v1518 = vpack.c.bf16 %v1509, %v1507
    %v1519 = vpack.c.bf16 %v1514, %v1512
    %v1520 = vld [vmem:[%s7] sm:$0xf]
    %v1521 = vld [vmem:[%s7 + $0x4] sm:$0xf]
    %v1522 = vld [vmem:[%s7 + $0x8] sm:$0xf]
    %v1523 = vld [vmem:[%s7 + $0xc] sm:$0xf]
    %v1524 = vld [vmem:[%s7 + $0x10] sm:$0xf]
    %v1525 = vld [vmem:[%s7 + $0x14] sm:$0xf]
    %v1526 = vld [vmem:[%s7 + $0x18] sm:$0xf]
    %v1527 = vld [vmem:[%s7 + $0x1c] sm:$0xf]
    %v1528 = vld [vmem:[%s7 + $0x20] sm:$0xf]
    %v1529 = vld [vmem:[%s7 + $0x24] sm:$0xf]
    %v1530 = vld [vmem:[%s7 + $0x28] sm:$0xf]
    %v1531 = vld [vmem:[%s7 + $0x2c] sm:$0xf]
    %v1532 = vld [vmem:[%s7 + $0x30] sm:$0xf]
    %v1533 = vld [vmem:[%s7 + $0x34] sm:$0xf]
    %v1534 = vld [vmem:[%s7 + $0x38] sm:$0xf]
    %v1535 = vld [vmem:[%s7 + $0x3c] sm:$0xf]
    %v1536 = vld [vmem:[%s8] sm:$0x1]
    %v1538 = vperm.slane %v1536, 0
    %v1556 = vunpack.c.l.b16 %v1520
    %v1557 = vunpack.c.l.b16 %v1521
    %v1558 = vunpack.c.l.b16 %v1522
    %v1559 = vunpack.c.l.b16 %v1523
    %v1560 = vunpack.c.l.b16 %v1524
    %v1561 = vunpack.c.l.b16 %v1525
    %v1562 = vunpack.c.l.b16 %v1526
    %v1563 = vunpack.c.l.b16 %v1527
    %v1564 = vunpack.c.l.b16 %v1528
    %v1565 = vunpack.c.l.b16 %v1529
    %v1566 = vunpack.c.l.b16 %v1530
    %v1567 = vunpack.c.l.b16 %v1531
    %v1568 = vunpack.c.l.b16 %v1532
    %v1569 = vunpack.c.l.b16 %v1533
    %v1570 = vunpack.c.l.b16 %v1534
    %v1571 = vunpack.c.l.b16 %v1535
    %v1572 = vpack.c.b16 %v1557, %v1556
    %v1573 = vpack.c.b16 %v1559, %v1558
    %v1574 = vpack.c.b16 %v1561, %v1560
    %v1575 = vpack.c.b16 %v1563, %v1562
    %v1576 = vpack.c.b16 %v1565, %v1564
    %v1577 = vpack.c.b16 %v1567, %v1566
    %v1578 = vpack.c.b16 %v1569, %v1568
    %v1579 = vpack.c.b16 %v1571, %v1570
    %1588 = vmatpush.bf16.msra.mxu0 %v1579
    %1589 = vmatpush.bf16.msra.mxu0 %v1578
    %1590 = vmatpush.bf16.msra.mxu0 %v1577
    %1591 = vmatpush.bf16.msra.mxu0 %v1576
    %1592 = vmatpush.bf16.msra.mxu0 %v1575
    %1593 = vmatpush.bf16.msra.mxu0 %v1574
    %1594 = vmatpush.bf16.msra.mxu0 %v1573
    %1595 = vmatpush.bf16.msra.mxu0 %v1572
    %1596 = vmatmul.bf16.gmra.mxu0 %v1516
    %v1597 = vpop.f32.mrf.mxu0
    %v1598 = vadd.f32 %v1538, %v1597
    %v1599 = vpop.f32.mrf.mxu0
    %v1600 = vadd.f32 %v1538, %v1599
    %1601 = vmatmul.bf16.gmra.mxu0 %v1517
    %v1602 = vpop.f32.mrf.mxu0
    %v1603 = vadd.f32 %v1538, %v1602
    %v1604 = vpop.f32.mrf.mxu0
    %v1605 = vadd.f32 %v1538, %v1604
    %1606 = vmatmul.bf16.gmra.mxu0 %v1518
    %v1607 = vpop.f32.mrf.mxu0
    %v1608 = vadd.f32 %v1538, %v1607
    %v1609 = vpop.f32.mrf.mxu0
    %v1610 = vadd.f32 %v1538, %v1609
    %1611 = vmatmul.bf16.gmra.mxu0 %v1519
    %v1612 = vpop.f32.mrf.mxu0
    %v1613 = vadd.f32 %v1538, %v1612
    %v1614 = vpop.f32.mrf.mxu0
    %v1615 = vadd.f32 %v1538, %v1614
    %1616 = vdwg.mxu0
    %1617 = vst [vmem:[%s9] sm:$0xff] %v1598
    %1618 = vst [vmem:[%s9 + $0x8] sm:$0xff] %v1600
    %1619 = vst [vmem:[%s9 + $0x10] sm:$0xff] %v1603
    %1620 = vst [vmem:[%s9 + $0x18] sm:$0xff] %v1605
    %1621 = vst [vmem:[%s9 + $0x20] sm:$0xff] %v1608
    %1622 = vst [vmem:[%s9 + $0x28] sm:$0xff] %v1610
    %1623 = vst [vmem:[%s9 + $0x30] sm:$0xff] %v1613
    %1624 = vst [vmem:[%s9 + $0x38] sm:$0xff] %v1615
    // Predicated region
    $region42: #{rgcn_forward.1} parent=1 // pred_check
      _
    $region43: #{rgcn_forward.1} parent=1 // pred_check_branch
      %1626 = sbr.rel (0) target = $region45
    $region44: #{rgcn_forward.1} parent=1 // pred_region
      _
    $region45: #{rgcn_forward.1} parent=1 // pred_fallthru
      _
    // Predicated region
    $region46: #{rgcn_forward.1} parent=1 // pred_check
      _
    $region47: #{rgcn_forward.1} parent=1 // pred_check_branch
      %1628 = sbr.rel (0) target = $region49
    $region48: #{rgcn_forward.1} parent=1 // pred_region
      _
    $region49: #{rgcn_forward.1} parent=1 // pred_fallthru
      _
    %1629 = vsyncpa [#allocation3], 1

</llo_original>
